<compile_context>
chip_gen: v7x
topology: tpu7x:2x2x1
jax: 0.10.0
libtpu: 0.0.40
codegen_flags: <defaults>
</compile_context>

<pallas_src>
import functools

import jax
import jax.numpy as jnp
from jax import lax
from jax.experimental import pallas as pl
from jax.experimental.pallas import tpu as pltpu


def _round_up(x, m):
    return ((x + m - 1) // m) * m


# ----------------------------- Fused 1x1x1 conv + BN + ReLU kernel -----------------------------
def _pointwise_bn_relu_kernel(x_ref, w_ref, b_ref, o_ref, *, cin, use_mxu):
    # x_ref: (N, Cin, TM)   w_ref: (Cout, Cin)   b_ref: (Cout, 1)   o_ref: (N, Cout, TM)
    w = w_ref[...]                              # (Cout, Cin), BN scale already folded in
    b = b_ref[...]                              # (Cout, 1)
    n_batch = x_ref.shape[0]                    # static; batch folded into the block
    cout = w.shape[0]
    tm = x_ref.shape[2]

    if not use_mxu:
        # Hoisted once per grid step (JAX does not CSE broadcast_in_dim inside the n-loop).
        y_bias = jnp.broadcast_to(b, (cout, tm))
        w_cols = [w[:, c:c + 1] for c in range(cin)]        # (Cout, 1) each, hoisted

    for n in range(n_batch):                    # static unroll; N (batch) is small
        x = x_ref[n]                            # (Cin, TM) lane-dense load
        if use_mxu:
            # Real contraction: use the MXU.  Compute/accumulate in f32.
            y = jnp.dot(w, x, preferred_element_type=jnp.float32) + b
        else:
            # Tiny Cin: Cin VPU broadcast-FMAs; a (Cout,Cin)x(Cin,TM) matmul would use a
            # sliver of the 256x256 MXU and pay result-FIFO drain per tiny dot.
            y = y_bias
            for c in range(cin):                # static unroll, cin is small
                y = y + w_cols[c] * x[c:c + 1, :]
        # ReLU in f32, cast only at the store (keeps v5e on the f32 VPU path; bf16 output
        # halves writeback bytes on this HBM-bound kernel when requested).
        o_ref[n] = jnp.maximum(y, 0.0).astype(o_ref.dtype)


def pointwise_conv_bn_relu(x_flat, w_folded, bias, *, out_dtype=jnp.float32,
                           vmem_block_budget_bytes=12 * 2**20, max_tile_m=4096):
    # x_flat: (N, Cin, M) float32 ; w_folded: (Cout, Cin) ; bias: (Cout, 1)
    N, Cin, M = x_flat.shape
    Cout = w_folded.shape[0]

    # Pad the flattened spatial axis to a multiple of 128 so every store is an unmasked,
    # lane-dense vst (the biggest single writeback lever).
    M_pad = _round_up(M, 128)
    if M_pad != M:
        x_flat = jnp.pad(x_flat, ((0, 0), (0, 0), (0, M_pad - M)))

    in_bytes = jnp.dtype(x_flat.dtype).itemsize
    out_bytes = jnp.dtype(out_dtype).itemsize

    # TILE_M: largest multiple of 128 such that the double-buffered in+out blocks stay
    # inside a conservative budget (v7x: 64 MiB physical VMEM, 32 MiB default scoped).
    per_lane_bytes = 2 * N * (Cin * in_bytes + Cout * out_bytes)
    tile_m = (vmem_block_budget_bytes // per_lane_bytes) // 128 * 128
    tile_m = max(128, min(tile_m, max_tile_m, M_pad))
    # Keep >=2 grid steps whenever M can be split: v7x has 2 TensorCores per chip and a
    # "parallel" grid axis is sharded across them; the extra ~0.35us step cost is noise
    # on 1-TC v5e/v6e.
    if pl.cdiv(M_pad, tile_m) < 2 and M_pad >= 256:
        tile_m = _round_up(M_pad // 2, 128)
    m_tiles = pl.cdiv(M_pad, tile_m)

    # Explicit VMEM limit sized from the actual blocks (2x headroom), min 8 MiB.
    need = (2 * N * (Cin * in_bytes + Cout * out_bytes) * tile_m
            + 2 * (Cout * Cin + Cout) * 4)
    vmem_limit = int(min(100 * 2**20, max(8 * 2**20, 2 * need)))

    # VPU-vs-MXU crossover: 256x256 MXU on v6e/v7x means tiny-Cin dots are a poor fit.
    use_mxu = Cin >= 16
    kernel = functools.partial(_pointwise_bn_relu_kernel, cin=Cin, use_mxu=use_mxu)

    out = pl.pallas_call(
        kernel,
        out_shape=jax.ShapeDtypeStruct((N, Cout, M_pad), out_dtype),
        grid_spec=pltpu.PrefetchScalarGridSpec(
            num_scalar_prefetch=0,
            grid=(m_tiles,),
            in_specs=[
                pl.BlockSpec((N, Cin, tile_m), lambda j: (0, 0, j)),
                pl.BlockSpec((Cout, Cin), lambda j: (0, 0)),
                pl.BlockSpec((Cout, 1), lambda j: (0, 0)),
            ],
            out_specs=pl.BlockSpec((N, Cout, tile_m), lambda j: (0, 0, j)),
        ),
        compiler_params=pltpu.CompilerParams(
            dimension_semantics=("parallel",),
            vmem_limit_bytes=vmem_limit,
        ),
    )(x_flat, w_folded, bias)

    if M_pad != M:
        out = out[:, :, :M]
    return out


# ----------------------------- Module wrapper -----------------------------
def inception_branch0_forward(x_ncdhw, w, gamma, beta, mean, var, eps=1e-5,
                              out_dtype=jnp.float32):
    """x_ncdhw: (N, Cin, D, H, W) float32 (PyTorch layout).  Returns (N, Cout, D, H, W)."""
    N, Cin, D, H, W = x_ncdhw.shape
    Cout = w.shape[0]

    # Fold inference-mode BN into the conv: y = relu((w@x) * scale + (beta - mean*scale))
    scale = gamma / jnp.sqrt(var + eps)               # (Cout,)
    w_folded = w * scale[:, None]                     # (Cout, Cin)
    bias = (beta - mean * scale)[:, None]             # (Cout, 1)

    M = D * H * W
    x_flat = x_ncdhw.reshape(N, Cin, M)               # pure reshape of NCDHW, no transpose
    out = pointwise_conv_bn_relu(x_flat, w_folded, bias, out_dtype=out_dtype)
    return out.reshape(N, Cout, D, H, W)


# ----------------------------- Main -----------------------------
if __name__ == "__main__":
    # Module config: name='Mixed_3b' -> out_channels = 64 for branch0's 1x1x1 conv.
    name = "Mixed_3b"
    Cin, Cout = 4, 64
    N, D, H, W = 2, 4, 8, 8

    key = jax.random.PRNGKey(0)
    ks = jax.random.split(key, 6)

    x = jax.random.normal(ks[0], (N, Cin, D, H, W), jnp.float32)

    # Conv3d 1x1x1 weight (no bias, Conv3dBlock default use_bias=False); OIDHW squeezed to (O, I).
    w = 0.2 * jax.random.normal(ks[1], (Cout, Cin), jnp.float32)

    # BatchNorm3d parameters (inference form), deterministic.
    gamma = 1.0 + 0.1 * jax.random.normal(ks[2], (Cout,), jnp.float32)
    beta = 0.1 * jax.random.normal(ks[3], (Cout,), jnp.float32)
    mean = 0.1 * jax.random.normal(ks[4], (Cout,), jnp.float32)
    var = jax.random.uniform(ks[5], (Cout,), jnp.float32, 0.5, 1.5)

    # f32 output (matches the PyTorch module's dtype semantics).
    out = inception_branch0_forward(x, w, gamma, beta, mean, var)
    out = jax.block_until_ready(out)
    assert out.shape == (N, Cout, D, H, W), out.shape

    # Pure-JAX reference (same inference-mode BN math).
    eps = 1e-5
    scale = gamma / jnp.sqrt(var + eps)
    bias = beta - mean * scale
    M = D * H * W
    ref = jnp.einsum("ncm,oc->nom", x.reshape(N, Cin, M), w,
                     precision=lax.Precision.HIGHEST)
    ref = ref * scale[None, :, None] + bias[None, :, None]
    ref = jnp.maximum(ref, 0.0).reshape(N, Cout, D, H, W)

    err = jnp.max(jnp.abs(out - ref))
    assert float(err) < 1e-3, f"max abs err {err}"

    # bf16-output path (halves output HBM bytes; compute/accumulation stays f32).
    out_bf16 = inception_branch0_forward(x, w, gamma, beta, mean, var,
                                         out_dtype=jnp.bfloat16)
    out_bf16 = jax.block_until_ready(out_bf16)
    err_bf16 = jnp.max(jnp.abs(out_bf16.astype(jnp.float32) - ref))
    assert float(err_bf16) < 5e-2, f"bf16 max abs err {err_bf16}"

    print("KERNEL_OK")
</pallas_src>

<mosaic_0001>
module attributes {stable_mosaic.version = 11 : i64} {
  func.func @_pointwise_bn_relu_kernel(%arg0: i32, %arg1: memref<2x4x128xf32, #tpu.memory_space<vmem>>, %arg2: memref<64x4xf32, #tpu.memory_space<vmem>>, %arg3: memref<64x1xf32, #tpu.memory_space<vmem>>, %arg4: memref<2x64x128xf32, #tpu.memory_space<vmem>>) attributes {dimension_semantics = [#tpu.dimension_semantics<parallel>], iteration_bounds = array<i64: 2>, scalar_prefetch = 0 : i64, scratch_operands = 0 : i64, tpu.core_type = #tpu.core_type<tc>, window_params = [{transform_indices = @transform_0, window_bounds = array<i64: 2, 4, 128>}, {pipeline_mode = #tpu.pipeline_mode<synchronous>, transform_indices = @transform_1, window_bounds = array<i64: 64, 4>}, {pipeline_mode = #tpu.pipeline_mode<synchronous>, transform_indices = @transform_2, window_bounds = array<i64: 64, 1>}, {transform_indices = @transform_3, window_bounds = array<i64: 2, 64, 128>}]} {
    %c0 = arith.constant 0 : index
    %c0_0 = arith.constant 0 : index
    %0 = vector.load %arg2[%c0, %c0_0] : memref<64x4xf32, #tpu.memory_space<vmem>>, vector<64x4xf32>
    %c0_1 = arith.constant 0 : index
    %c0_2 = arith.constant 0 : index
    %1 = vector.load %arg3[%c0_1, %c0_2] : memref<64x1xf32, #tpu.memory_space<vmem>>, vector<64x1xf32>
    %2 = vector.shape_cast %1 : vector<64x1xf32> to vector<64x1xf32>
    %3 = vector.broadcast %2 : vector<64x1xf32> to vector<64x128xf32>
    %4 = vector.extract_strided_slice %0 {offsets = [0, 0], sizes = [64, 1], strides = [1, 1]} : vector<64x4xf32> to vector<64x1xf32>
    %5 = vector.extract_strided_slice %0 {offsets = [0, 1], sizes = [64, 1], strides = [1, 1]} : vector<64x4xf32> to vector<64x1xf32>
    %6 = vector.extract_strided_slice %0 {offsets = [0, 2], sizes = [64, 1], strides = [1, 1]} : vector<64x4xf32> to vector<64x1xf32>
    %7 = vector.extract_strided_slice %0 {offsets = [0, 3], sizes = [64, 1], strides = [1, 1]} : vector<64x4xf32> to vector<64x1xf32>
    %c0_3 = arith.constant 0 : index
    %c0_4 = arith.constant 0 : index
    %c0_5 = arith.constant 0 : index
    %8 = vector.load %arg1[%c0_3, %c0_4, %c0_5] : memref<2x4x128xf32, #tpu.memory_space<vmem>>, vector<1x4x128xf32>
    %9 = vector.shape_cast %8 : vector<1x4x128xf32> to vector<4x128xf32>
    %10 = vector.extract_strided_slice %9 {offsets = [0, 0], sizes = [1, 128], strides = [1, 1]} : vector<4x128xf32> to vector<1x128xf32>
    %11 = vector.broadcast %4 : vector<64x1xf32> to vector<64x128xf32>
    %12 = vector.broadcast %10 : vector<1x128xf32> to vector<64x128xf32>
    %13 = arith.mulf %11, %12 : vector<64x128xf32>
    %14 = arith.addf %3, %13 : vector<64x128xf32>
    %15 = vector.extract_strided_slice %9 {offsets = [1, 0], sizes = [1, 128], strides = [1, 1]} : vector<4x128xf32> to vector<1x128xf32>
    %16 = vector.broadcast %5 : vector<64x1xf32> to vector<64x128xf32>
    %17 = vector.broadcast %15 : vector<1x128xf32> to vector<64x128xf32>
    %18 = arith.mulf %16, %17 : vector<64x128xf32>
    %19 = arith.addf %14, %18 : vector<64x128xf32>
    %20 = vector.extract_strided_slice %9 {offsets = [2, 0], sizes = [1, 128], strides = [1, 1]} : vector<4x128xf32> to vector<1x128xf32>
    %21 = vector.broadcast %6 : vector<64x1xf32> to vector<64x128xf32>
    %22 = vector.broadcast %20 : vector<1x128xf32> to vector<64x128xf32>
    %23 = arith.mulf %21, %22 : vector<64x128xf32>
    %24 = arith.addf %19, %23 : vector<64x128xf32>
    %25 = vector.extract_strided_slice %9 {offsets = [3, 0], sizes = [1, 128], strides = [1, 1]} : vector<4x128xf32> to vector<1x128xf32>
    %26 = vector.broadcast %7 : vector<64x1xf32> to vector<64x128xf32>
    %27 = vector.broadcast %25 : vector<1x128xf32> to vector<64x128xf32>
    %28 = arith.mulf %26, %27 : vector<64x128xf32>
    %29 = arith.addf %24, %28 : vector<64x128xf32>
    %cst = arith.constant 0.000000e+00 : f32
    %30 = vector.broadcast %cst : f32 to vector<64x128xf32>
    %31 = arith.maximumf %29, %30 : vector<64x128xf32>
    %c0_6 = arith.constant 0 : index
    %c0_7 = arith.constant 0 : index
    %c0_8 = arith.constant 0 : index
    %32 = vector.load %arg4[%c0_6, %c0_7, %c0_8] : memref<2x64x128xf32, #tpu.memory_space<vmem>>, vector<1x64x128xf32>
    %33 = vector.shape_cast %32 : vector<1x64x128xf32> to vector<64x128xf32>
    %34 = vector.shape_cast %31 : vector<64x128xf32> to vector<1x64x128xf32>
    tpu.vector_store %arg4[%c0_6, %c0_7, %c0_8], %34 {strides = array<i32>} : memref<2x64x128xf32, #tpu.memory_space<vmem>>, vector<1x64x128xf32>,
    %c1 = arith.constant 1 : index
    %c0_9 = arith.constant 0 : index
    %c0_10 = arith.constant 0 : index
    %35 = vector.load %arg1[%c1, %c0_9, %c0_10] : memref<2x4x128xf32, #tpu.memory_space<vmem>>, vector<1x4x128xf32>
    %36 = vector.shape_cast %35 : vector<1x4x128xf32> to vector<4x128xf32>
    %37 = vector.extract_strided_slice %36 {offsets = [0, 0], sizes = [1, 128], strides = [1, 1]} : vector<4x128xf32> to vector<1x128xf32>
    %38 = vector.broadcast %4 : vector<64x1xf32> to vector<64x128xf32>
    %39 = vector.broadcast %37 : vector<1x128xf32> to vector<64x128xf32>
    %40 = arith.mulf %38, %39 : vector<64x128xf32>
    %41 = arith.addf %3, %40 : vector<64x128xf32>
    %42 = vector.extract_strided_slice %36 {offsets = [1, 0], sizes = [1, 128], strides = [1, 1]} : vector<4x128xf32> to vector<1x128xf32>
    %43 = vector.broadcast %5 : vector<64x1xf32> to vector<64x128xf32>
    %44 = vector.broadcast %42 : vector<1x128xf32> to vector<64x128xf32>
    %45 = arith.mulf %43, %44 : vector<64x128xf32>
    %46 = arith.addf %41, %45 : vector<64x128xf32>
    %47 = vector.extract_strided_slice %36 {offsets = [2, 0], sizes = [1, 128], strides = [1, 1]} : vector<4x128xf32> to vector<1x128xf32>
    %48 = vector.broadcast %6 : vector<64x1xf32> to vector<64x128xf32>
    %49 = vector.broadcast %47 : vector<1x128xf32> to vector<64x128xf32>
    %50 = arith.mulf %48, %49 : vector<64x128xf32>
    %51 = arith.addf %46, %50 : vector<64x128xf32>
    %52 = vector.extract_strided_slice %36 {offsets = [3, 0], sizes = [1, 128], strides = [1, 1]} : vector<4x128xf32> to vector<1x128xf32>
    %53 = vector.broadcast %7 : vector<64x1xf32> to vector<64x128xf32>
    %54 = vector.broadcast %52 : vector<1x128xf32> to vector<64x128xf32>
    %55 = arith.mulf %53, %54 : vector<64x128xf32>
    %56 = arith.addf %51, %55 : vector<64x128xf32>
    %cst_11 = arith.constant 0.000000e+00 : f32
    %57 = vector.broadcast %cst_11 : f32 to vector<64x128xf32>
    %58 = arith.maximumf %56, %57 : vector<64x128xf32>
    %c1_12 = arith.constant 1 : index
    %c0_13 = arith.constant 0 : index
    %c0_14 = arith.constant 0 : index
    %59 = vector.load %arg4[%c1_12, %c0_13, %c0_14] : memref<2x64x128xf32, #tpu.memory_space<vmem>>, vector<1x64x128xf32>
    %60 = vector.shape_cast %59 : vector<1x64x128xf32> to vector<64x128xf32>
    %61 = vector.shape_cast %58 : vector<64x128xf32> to vector<1x64x128xf32>
    tpu.vector_store %arg4[%c1_12, %c0_13, %c0_14], %61 {strides = array<i32>} : memref<2x64x128xf32, #tpu.memory_space<vmem>>, vector<1x64x128xf32>,
    return
  }
  func.func @transform_0(%arg0: i32) -> (i32, i32, i32) {
    %c0_i32 = arith.constant 0 : i32
    %c0_i32_0 = arith.constant 0 : i32
    %c0_i32_1 = arith.constant 0 : i32
    return %c0_i32, %c0_i32_0, %arg0 : i32, i32, i32
  }
  func.func @transform_1(%arg0: i32) -> (i32, i32) {
    %c0_i32 = arith.constant 0 : i32
    %c0_i32_0 = arith.constant 0 : i32
    %c0_i32_1 = arith.constant 0 : i32
    return %c0_i32, %c0_i32_0 : i32, i32
  }
  func.func @transform_2(%arg0: i32) -> (i32, i32) {
    %c0_i32 = arith.constant 0 : i32
    %c0_i32_0 = arith.constant 0 : i32
    %c0_i32_1 = arith.constant 0 : i32
    return %c0_i32, %c0_i32_0 : i32, i32
  }
  func.func @transform_3(%arg0: i32) -> (i32, i32, i32) {
    %c0_i32 = arith.constant 0 : i32
    %c0_i32_0 = arith.constant 0 : i32
    %c0_i32_1 = arith.constant 0 : i32
    return %c0_i32, %c0_i32_0, %arg0 : i32, i32, i32
  }
}

</mosaic_0001>

<llo_original>
// kernel: tpu_custom_call.1
$region0: #{tpu_custom_call.1}
  #allocation0 [shape = 'u32[]', space=smem, size = 0x4, offset = 0x4, fixed_abs, tag = 'smem constant byte address 0x4 - core index']
  #allocation1 [shape = 'u32[144,128]{1,0:T(1,128)}', space=vmem, size = 0x12000, scoped, tag = 'internal scratch']
  %s0 = inlined_call_operand.vmem [shape: f32[2,4,256], index: 0, kind: input, shape index: {}]
  %s1 = inlined_call_operand.vmem [shape: f32[64,4], index: 1, kind: input, shape index: {}]
  %s2 = inlined_call_operand.vmem [shape: f32[64,1], index: 2, kind: input, shape index: {}]
  %s3 = inlined_call_operand.hbm [shape: f32[2,64,256], index: 3, kind: output, shape index: {}]
  %s4 = sld [smem:[#allocation0]]
  $region86: #{tpu_custom_call.1} parent=0
    _
  %s6 = ssub.s32 1, %s4
  %s7 = scalar_select 0, %s6, %s4
  $region1: #{tpu_custom_call.1} parent=0
    #allocation2 [shape = 'u8[8192]{0}', space=vmem, size = 0x2000, scoped, tag = 'input window, operand 0']
    #allocation3 [shape = 'u8[131072]{0}', space=vmem, size = 0x20000, scoped, tag = 'output window, operand 0']
    #allocation4 [shape = 's32[2]{0}', space=sflag, size = 0x8, scoped, tag = 'scoped memory for tpu_custom_call.1']
    %8 = vsyncpa [#allocation4], 0
    %s9 = scalar_lea.sflag [#allocation4], 1
    %10 = vsyncpa %s9, 0
    loop: start=0, step=1, limit=4
    $region2: #{tpu_custom_call.1} parent=1 // loop_pre_header
      _
    $region3: #{tpu_custom_call.1} parent=1 // loop_header
      %s12 = sphi 0, %s16
      %p13 = scmp.ge.s32.totalorder %s12, 4
      %s22 = sphi 0, %s24
      %s25 = sphi 0, %s22
      %s26 = sphi 0, %s25
      %s42 = sphi 0, %s26
      %s46 = sphi 0, %s46
      %s48 = sphi 0, %s46
      %s49 = sphi 0, %s48
      %s63 = sphi 0, %s49
      %s67 = sphi 0, %s67
      %s69 = sphi 0, %s67
      %s70 = sphi 0, %s69
      %s84 = sphi 0, %s70
      %s90 = sphi 0, %s92
      %s93 = sphi 0, %s90
      %s94 = sphi 0, %s93
      %s110 = sphi 0, %s94
    $region4: #{tpu_custom_call.1} parent=1 // loop_header_branch
      %15 = sbr.rel (%p13) target = $region8
    $region5: #{tpu_custom_call.1} parent=1 // loop_body
      %s17 = ssub.s32 %s12, 1
      %s18 = ssub.s32 %s12, 2
      %s19 = sadd.s32 %s12, 1
      %s20 = ssub.s32 %s12, %s19
      %p21 = scmp.eq.s32.totalorder %s20, 0
      %s23 = sadd.s32 %s22, 1
      %s24 = scalar_select %p21, %s22, %s23
      %p27 = pneg %p21
      %p28 = scmp.eq.s32.totalorder %s12, 1
      %p29 = por %p27, %p28
      %p30 = scmp.ne.s32.totalorder %s22, %s25
      %p31 = scmp.eq.s32.totalorder %s12, 0
      %p32 = por %p30, %p31
      %p33 = scmp.ne.s32.totalorder %s22, %s25
      %p34 = scmp.eq.s32.totalorder %s17, 1
      %p35 = por %p33, %p34
      %p36 = scmp.ne.s32.totalorder %s25, %s26
      %p37 = scmp.eq.s32.totalorder %s17, 0
      %p38 = por %p36, %p37
      %p39 = scmp.ne.s32.totalorder %s25, %s26
      %p40 = scmp.eq.s32.totalorder %s18, 1
      %p41 = por %p39, %p40
      %p43 = scmp.ne.s32.totalorder %s26, %s42
      %p44 = scmp.eq.s32.totalorder %s18, 0
      %p45 = por %p43, %p44
      %s47 = sadd.s32 %s46, 1
      %p50 = scmp.eq.s32.totalorder %s12, 1
      %p51 = scmp.ne.s32.totalorder %s46, %s48
      %p52 = scmp.eq.s32.totalorder %s12, 0
      %p53 = por %p51, %p52
      %p54 = scmp.ne.s32.totalorder %s46, %s48
      %p55 = scmp.eq.s32.totalorder %s17, 1
      %p56 = por %p54, %p55
      %p57 = scmp.ne.s32.totalorder %s48, %s49
      %p58 = scmp.eq.s32.totalorder %s17, 0
      %p59 = por %p57, %p58
      %p60 = scmp.ne.s32.totalorder %s48, %s49
      %p61 = scmp.eq.s32.totalorder %s18, 1
      %p62 = por %p60, %p61
      %p64 = scmp.ne.s32.totalorder %s49, %s63
      %p65 = scmp.eq.s32.totalorder %s18, 0
      %p66 = por %p64, %p65
      %s68 = sadd.s32 %s67, 1
      %p71 = scmp.eq.s32.totalorder %s12, 1
      %p72 = scmp.ne.s32.totalorder %s67, %s69
      %p73 = scmp.eq.s32.totalorder %s12, 0
      %p74 = por %p72, %p73
      %p75 = scmp.ne.s32.totalorder %s67, %s69
      %p76 = scmp.eq.s32.totalorder %s17, 1
      %p77 = por %p75, %p76
      %p78 = scmp.ne.s32.totalorder %s69, %s70
      %p79 = scmp.eq.s32.totalorder %s17, 0
      %p80 = por %p78, %p79
      %p81 = scmp.ne.s32.totalorder %s69, %s70
      %p82 = scmp.eq.s32.totalorder %s18, 1
      %p83 = por %p81, %p82
      %p85 = scmp.ne.s32.totalorder %s70, %s84
      %p86 = scmp.eq.s32.totalorder %s18, 0
      %p87 = por %p85, %p86
      %s88 = ssub.s32 %s12, %s19
      %p89 = scmp.eq.s32.totalorder %s88, 0
      %s91 = sadd.s32 %s90, 1
      %s92 = scalar_select %p89, %s90, %s91
      %p95 = pneg %p89
      %p96 = scmp.eq.s32.totalorder %s12, 1
      %p97 = por %p95, %p96
      %p98 = scmp.ne.s32.totalorder %s90, %s93
      %p99 = scmp.eq.s32.totalorder %s12, 0
      %p100 = por %p98, %p99
      %p101 = scmp.ne.s32.totalorder %s90, %s93
      %p102 = scmp.eq.s32.totalorder %s17, 1
      %p103 = por %p101, %p102
      %p104 = scmp.ne.s32.totalorder %s93, %s94
      %p105 = scmp.eq.s32.totalorder %s17, 0
      %p106 = por %p104, %p105
      %p107 = scmp.ne.s32.totalorder %s93, %s94
      %p108 = scmp.eq.s32.totalorder %s18, 1
      %p109 = por %p107, %p108
      %p111 = scmp.ne.s32.totalorder %s94, %s110
      %p112 = scmp.eq.s32.totalorder %s18, 0
      %p113 = por %p111, %p112
      %p114 = scmp.le.s32.totalorder 1, %s12
      %p115 = scmp.lt.s32.totalorder %s12, 3
      %p116 = pnand %p114, %p115
      %p117 = pneg %p116
      // Predicated region
      $region9: #{tpu_custom_call.1} parent=5 // pred_check
        _
      $region10: #{tpu_custom_call.1} parent=5 // pred_check_branch
        %119 = sbr.rel (%p116) target = $region12
      $region11: #{tpu_custom_call.1} parent=5 // pred_region
        %s120 = ssub.s32 %s12, 1
        // Predicated region
        $region13: #{tpu_custom_call.1} parent=11 // pred_check
          %p121 = pneg %p59
        $region14: #{tpu_custom_call.1} parent=11 // pred_check_branch
          %123 = sbr.rel (%p121) target = $region16
        $region15: #{tpu_custom_call.1} parent=11 // pred_region
          _
        $region16: #{tpu_custom_call.1} parent=11 // pred_fallthru
          _
        // Predicated region
        $region17: #{tpu_custom_call.1} parent=11 // pred_check
          %p124 = pneg %p80
        $region18: #{tpu_custom_call.1} parent=11 // pred_check_branch
          %126 = sbr.rel (%p124) target = $region20
        $region19: #{tpu_custom_call.1} parent=11 // pred_region
          _
        $region20: #{tpu_custom_call.1} parent=11 // pred_fallthru
          _
      $region12: #{tpu_custom_call.1} parent=5 // pred_fallthru
        _
      %p127 = scmp.lt.s32.totalorder %s12, 2
      // Predicated region
      $region21: #{tpu_custom_call.1} parent=5 // pred_check
        %p128 = pneg %p127
      $region22: #{tpu_custom_call.1} parent=5 // pred_check_branch
        %130 = sbr.rel (%p128) target = $region24
      $region23: #{tpu_custom_call.1} parent=5 // pred_region
        // Predicated region
        $region25: #{tpu_custom_call.1} parent=23 // pred_check
          %p131 = pneg %p32
        $region26: #{tpu_custom_call.1} parent=23 // pred_check_branch
          %133 = sbr.rel (%p131) target = $region28
        $region27: #{tpu_custom_call.1} parent=23 // pred_region
          %s134 = sand.u32 %s22, 1
          %s135 = sand.u32 %s22, 1
          %s136 = smul.addr %s135, 8
          %s137 = scalar_lea.vmem [#allocation2], %s136
          %s138 = smul.addr %s12, 4
          %s139 = scalar_lea.vmem %s0, %s138
          // Predicated region
          $region29: #{tpu_custom_call.1} parent=27 // pred_check
            _
          $region30: #{tpu_custom_call.1} parent=27 // pred_check_branch
            %141 = sbr.rel (0) target = $region32
          $region31: #{tpu_custom_call.1} parent=27 // pred_region
            // Predicated region
            $region33: #{tpu_custom_call.1} parent=31 // pred_check
              _
            $region34: #{tpu_custom_call.1} parent=31 // pred_check_branch
              %143 = sbr.rel target = $region36
            $region35: #{tpu_custom_call.1} parent=31 // pred_region
              // Predicated region
              $region48: #{tpu_custom_call.1} parent=35 // pred_check
                _
              $region49: #{tpu_custom_call.1} parent=35 // pred_check_branch
                %160 = sbr.rel (0) target = $region51
              $region50: #{tpu_custom_call.1} parent=35 // pred_region
                loop: start=0, step=1, limit=1
                $region52: #{tpu_custom_call.1} parent=50 // loop_pre_header
                  _
                $region53: #{tpu_custom_call.1} parent=50 // loop_header
                  %s162 = sphi 0, %s166
                  %p163 = scmp.ge.s32.totalorder %s162, 1
                  %s167 = sphi %s139, %s139
                  %s168 = sphi %s137, %s137
                $region54: #{tpu_custom_call.1} parent=50 // loop_header_branch
                  %165 = sbr.rel (%p163) target = $region58
                $region55: #{tpu_custom_call.1} parent=50 // loop_body
                  _
                $region56: #{tpu_custom_call.1} parent=50 // loop_footer
                  %s166 = sadd.s32 1, %s162
                $region57: #{tpu_custom_call.1} parent=50 // loop_footer_branch
                  %161 = sbr.rel target = $region53
                $region58: #{tpu_custom_call.1} parent=50 // loop_exit
                  _
                loop: start=0, step=1, limit=1
                $region59: #{tpu_custom_call.1} parent=50 // loop_pre_header
                  _
                $region60: #{tpu_custom_call.1} parent=50 // loop_header
                  %s171 = sphi 0, %s175
                  %p172 = scmp.ge.s32.totalorder %s171, 1
                  %s176 = sphi %s139, %s139
                  %s177 = sphi %s137, %s137
                $region61: #{tpu_custom_call.1} parent=50 // loop_header_branch
                  %174 = sbr.rel (%p172) target = $region65
                $region62: #{tpu_custom_call.1} parent=50 // loop_body
                  %v178 = vld [vmem:[%s176] sm:$0xf]
                  %179 = vst [vmem:[%s177] sm:$0xf] %v178
                  %v180 = vld [vmem:[%s176 + $0x8] sm:$0xf]
                  %181 = vst [vmem:[%s177 + $0x4] sm:$0xf] %v180
                $region63: #{tpu_custom_call.1} parent=50 // loop_footer
                  %s175 = sadd.s32 1, %s171
                $region64: #{tpu_custom_call.1} parent=50 // loop_footer_branch
                  %170 = sbr.rel target = $region60
                $region65: #{tpu_custom_call.1} parent=50 // loop_exit
                  _
              $region51: #{tpu_custom_call.1} parent=35 // pred_fallthru
                _
            $region36: #{tpu_custom_call.1} parent=31 // pred_fallthru
              _
            // Predicated region
            $region37: #{tpu_custom_call.1} parent=31 // pred_check
              _
            $region38: #{tpu_custom_call.1} parent=31 // pred_check_branch
              %145 = sbr.rel (0) target = $region40
            $region39: #{tpu_custom_call.1} parent=31 // pred_region
              loop: start=0, step=1, limit=1
              $region41: #{tpu_custom_call.1} parent=39 // loop_pre_header
                _
              $region42: #{tpu_custom_call.1} parent=39 // loop_header
                %s148 = sphi 0, %s152
                %p149 = scmp.ge.s32.totalorder %s148, 1
                %s153 = sphi %s139, %s139
                %s154 = sphi %s137, %s137
              $region43: #{tpu_custom_call.1} parent=39 // loop_header_branch
                %151 = sbr.rel (%p149) target = $region47
              $region44: #{tpu_custom_call.1} parent=39 // loop_body
                %v155 = vld [vmem:[%s153] sm:$0xf]
                %156 = vst [vmem:[%s154] sm:$0xf] %v155
                %v157 = vld [vmem:[%s153 + $0x8] sm:$0xf]
                %158 = vst [vmem:[%s154 + $0x4] sm:$0xf] %v157
              $region45: #{tpu_custom_call.1} parent=39 // loop_footer
                %s152 = sadd.s32 1, %s148
              $region46: #{tpu_custom_call.1} parent=39 // loop_footer_branch
                %147 = sbr.rel target = $region42
              $region47: #{tpu_custom_call.1} parent=39 // loop_exit
                _
            $region40: #{tpu_custom_call.1} parent=31 // pred_fallthru
              _
          $region32: #{tpu_custom_call.1} parent=27 // pred_fallthru
            _
          %182 = vnop
        $region28: #{tpu_custom_call.1} parent=23 // pred_fallthru
          _
      $region24: #{tpu_custom_call.1} parent=5 // pred_fallthru
        _
      %p183 = scmp.le.s32.totalorder 1, %s12
      %p184 = scmp.lt.s32.totalorder %s12, 3
      %p185 = pnand %p183, %p184
      %p186 = pneg %p185
      // Predicated region
      $region66: #{tpu_custom_call.1} parent=5 // pred_check
        _
      $region67: #{tpu_custom_call.1} parent=5 // pred_check_branch
        %188 = sbr.rel (%p185) target = $region69
      $region68: #{tpu_custom_call.1} parent=5 // pred_region
        %s189 = ssub.s32 %s12, 1
        %s190 = sand.u32 %s25, 1
        %s191 = sand.u32 %s25, 1
        %s192 = smul.addr %s191, 8
        %s193 = scalar_lea.vmem [#allocation2], %s192
        // Predicated region
        $region70: #{tpu_custom_call.1} parent=68 // pred_check
          %p194 = pneg %p38
        $region71: #{tpu_custom_call.1} parent=68 // pred_check_branch
          %196 = sbr.rel (%p194) target = $region73
        $region72: #{tpu_custom_call.1} parent=68 // pred_region
          _
        $region73: #{tpu_custom_call.1} parent=68 // pred_fallthru
          _
        %s197 = sand.u32 %s25, 1
        %s198 = sand.u32 %s25, 1
        %s199 = smul.addr %s198, 8
        %s200 = scalar_lea.vmem [#allocation2], %s199
        %p201 = pneg %p38
        %p202 = pneg %p35
        %p203 = pneg %p59
        %p204 = pneg %p56
        %p205 = pneg %p80
        %p206 = pneg %p77
        %p207 = pneg %p106
        %p208 = pneg %p103
        %s209 = sand.u32 %s93, 1
        %s210 = scalar_lea.sflag [#allocation4], %s209
        %s211 = sand.u32 %s93, 1
        %s212 = smul.addr %s211, 128
        %s213 = scalar_lea.vmem [#allocation3], %s212
        %v214 = vld [vmem:[%s1] sm:$0xff]
        %v215 = vld [vmem:[%s1 + $0x8] sm:$0xff]
        %v216 = vld [vmem:[%s1 + $0x10] sm:$0xff]
        %v217 = vld [vmem:[%s1 + $0x18] sm:$0xff]
        %v218 = vld [vmem:[%s1 + $0x20] sm:$0xff]
        %v219 = vld [vmem:[%s1 + $0x28] sm:$0xff]
        %v220 = vld [vmem:[%s1 + $0x30] sm:$0xff]
        %v221 = vld [vmem:[%s1 + $0x38] sm:$0xff]
        %v222 = vld [vmem:[%s2] sm:$0xff]
        %v223 = vld [vmem:[%s2 + $0x8] sm:$0xff]
        %v224 = vld [vmem:[%s2 + $0x10] sm:$0xff]
        %v225 = vld [vmem:[%s2 + $0x18] sm:$0xff]
        %v226 = vld [vmem:[%s2 + $0x20] sm:$0xff]
        %v227 = vld [vmem:[%s2 + $0x28] sm:$0xff]
        %v228 = vld [vmem:[%s2 + $0x30] sm:$0xff]
        %v229 = vld [vmem:[%s2 + $0x38] sm:$0xff]
        %231 = vset.pattern.permute.xlu0 0
        %232 = vperm.xlu0 %231, %v222
        %v233 = vpop.permute.xlu0 %232
        %236 = vset.pattern.permute.xlu0 0
        %237 = vperm.xlu0 %236, %v223
        %v238 = vpop.permute.xlu0 %237
        %241 = vset.pattern.permute.xlu0 0
        %242 = vperm.xlu0 %241, %v224
        %v243 = vpop.permute.xlu0 %242
        %246 = vset.pattern.permute.xlu0 0
        %247 = vperm.xlu0 %246, %v225
        %v248 = vpop.permute.xlu0 %247
        %251 = vset.pattern.permute.xlu0 0
        %252 = vperm.xlu0 %251, %v226
        %v253 = vpop.permute.xlu0 %252
        %256 = vset.pattern.permute.xlu0 0
        %257 = vperm.xlu0 %256, %v227
        %v258 = vpop.permute.xlu0 %257
        %261 = vset.pattern.permute.xlu0 0
        %262 = vperm.xlu0 %261, %v228
        %v263 = vpop.permute.xlu0 %262
        %266 = vset.pattern.permute.xlu0 0
        %267 = vperm.xlu0 %266, %v229
        %v268 = vpop.permute.xlu0 %267
        %v270 = vld [vmem:[%s193] sm:$0xf]
        %272 = vset.pattern.permute.xlu0 0
        %273 = vperm.xlu0 %272, %v214
        %v274 = vpop.permute.xlu0 %273
        %277 = vset.pattern.permute.xlu0 0
        %278 = vperm.xlu0 %277, %v215
        %v279 = vpop.permute.xlu0 %278
        %282 = vset.pattern.permute.xlu0 0
        %283 = vperm.xlu0 %282, %v216
        %v284 = vpop.permute.xlu0 %283
        %287 = vset.pattern.permute.xlu0 0
        %288 = vperm.xlu0 %287, %v217
        %v289 = vpop.permute.xlu0 %288
        %292 = vset.pattern.permute.xlu0 0
        %293 = vperm.xlu0 %292, %v218
        %v294 = vpop.permute.xlu0 %293
        %297 = vset.pattern.permute.xlu0 0
        %298 = vperm.xlu0 %297, %v219
        %v299 = vpop.permute.xlu0 %298
        %302 = vset.pattern.permute.xlu0 0
        %303 = vperm.xlu0 %302, %v220
        %v304 = vpop.permute.xlu0 %303
        %307 = vset.pattern.permute.xlu0 0
        %308 = vperm.xlu0 %307, %v221
        %v309 = vpop.permute.xlu0 %308
        %v311 = vlaneseq
        %v312 = vshrl.u32 %v311, 7
        %v313 = vsub.s32 0, %v312
        %v314 = vrot.slane %v270, %v313
        %v315 = vmul.f32 %v274, %v314
        %v316 = vmul.f32 %v279, %v314
        %v317 = vmul.f32 %v284, %v314
        %v318 = vmul.f32 %v289, %v314
        %v319 = vmul.f32 %v294, %v314
        %v320 = vmul.f32 %v299, %v314
        %v321 = vmul.f32 %v304, %v314
        %v322 = vmul.f32 %v309, %v314
        %v323 = vadd.f32 %v233, %v315
        %v324 = vadd.f32 %v238, %v316
        %v325 = vadd.f32 %v243, %v317
        %v326 = vadd.f32 %v248, %v318
        %v327 = vadd.f32 %v253, %v319
        %v328 = vadd.f32 %v258, %v320
        %v329 = vadd.f32 %v263, %v321
        %v330 = vadd.f32 %v268, %v322
        %331 = vset.pattern.permute.xlu0 1
        %332 = vperm.xlu0 %331, %v214
        %v333 = vpop.permute.xlu0 %332
        %335 = vset.pattern.permute.xlu0 1
        %336 = vperm.xlu0 %335, %v215
        %v337 = vpop.permute.xlu0 %336
        %339 = vset.pattern.permute.xlu0 1
        %340 = vperm.xlu0 %339, %v216
        %v341 = vpop.permute.xlu0 %340
        %343 = vset.pattern.permute.xlu0 1
        %344 = vperm.xlu0 %343, %v217
        %v345 = vpop.permute.xlu0 %344
        %347 = vset.pattern.permute.xlu0 1
        %348 = vperm.xlu0 %347, %v218
        %v349 = vpop.permute.xlu0 %348
        %351 = vset.pattern.permute.xlu0 1
        %352 = vperm.xlu0 %351, %v219
        %v353 = vpop.permute.xlu0 %352
        %355 = vset.pattern.permute.xlu0 1
        %356 = vperm.xlu0 %355, %v220
        %v357 = vpop.permute.xlu0 %356
        %359 = vset.pattern.permute.xlu0 1
        %360 = vperm.xlu0 %359, %v221
        %v361 = vpop.permute.xlu0 %360
        %v363 = vlaneseq
        %v364 = vshrl.u32 %v363, 7
        %v365 = vsub.s32 1, %v364
        %v366 = vrot.slane %v270, %v365
        %v367 = vmul.f32 %v333, %v366
        %v368 = vmul.f32 %v337, %v366
        %v369 = vmul.f32 %v341, %v366
        %v370 = vmul.f32 %v345, %v366
        %v371 = vmul.f32 %v349, %v366
        %v372 = vmul.f32 %v353, %v366
        %v373 = vmul.f32 %v357, %v366
        %v374 = vmul.f32 %v361, %v366
        %v375 = vadd.f32 %v323, %v367
        %v376 = vadd.f32 %v324, %v368
        %v377 = vadd.f32 %v325, %v369
        %v378 = vadd.f32 %v326, %v370
        %v379 = vadd.f32 %v327, %v371
        %v380 = vadd.f32 %v328, %v372
        %v381 = vadd.f32 %v329, %v373
        %v382 = vadd.f32 %v330, %v374
        %383 = vset.pattern.permute.xlu0 2
        %384 = vperm.xlu0 %383, %v214
        %v385 = vpop.permute.xlu0 %384
        %387 = vset.pattern.permute.xlu0 2
        %388 = vperm.xlu0 %387, %v215
        %v389 = vpop.permute.xlu0 %388
        %391 = vset.pattern.permute.xlu0 2
        %392 = vperm.xlu0 %391, %v216
        %v393 = vpop.permute.xlu0 %392
        %395 = vset.pattern.permute.xlu0 2
        %396 = vperm.xlu0 %395, %v217
        %v397 = vpop.permute.xlu0 %396
        %399 = vset.pattern.permute.xlu0 2
        %400 = vperm.xlu0 %399, %v218
        %v401 = vpop.permute.xlu0 %400
        %403 = vset.pattern.permute.xlu0 2
        %404 = vperm.xlu0 %403, %v219
        %v405 = vpop.permute.xlu0 %404
        %407 = vset.pattern.permute.xlu0 2
        %408 = vperm.xlu0 %407, %v220
        %v409 = vpop.permute.xlu0 %408
        %411 = vset.pattern.permute.xlu0 2
        %412 = vperm.xlu0 %411, %v221
        %v413 = vpop.permute.xlu0 %412
        %v415 = vlaneseq
        %v416 = vshrl.u32 %v415, 7
        %v417 = vsub.s32 2, %v416
        %v418 = vrot.slane %v270, %v417
        %v419 = vmul.f32 %v385, %v418
        %v420 = vmul.f32 %v389, %v418
        %v421 = vmul.f32 %v393, %v418
        %v422 = vmul.f32 %v397, %v418
        %v423 = vmul.f32 %v401, %v418
        %v424 = vmul.f32 %v405, %v418
        %v425 = vmul.f32 %v409, %v418
        %v426 = vmul.f32 %v413, %v418
        %v427 = vadd.f32 %v375, %v419
        %v428 = vadd.f32 %v376, %v420
        %v429 = vadd.f32 %v377, %v421
        %v430 = vadd.f32 %v378, %v422
        %v431 = vadd.f32 %v379, %v423
        %v432 = vadd.f32 %v380, %v424
        %v433 = vadd.f32 %v381, %v425
        %v434 = vadd.f32 %v382, %v426
        %435 = vset.pattern.permute.xlu0 3
        %436 = vperm.xlu0 %435, %v214
        %v437 = vpop.permute.xlu0 %436
        %439 = vset.pattern.permute.xlu0 3
        %440 = vperm.xlu0 %439, %v215
        %v441 = vpop.permute.xlu0 %440
        %443 = vset.pattern.permute.xlu0 3
        %444 = vperm.xlu0 %443, %v216
        %v445 = vpop.permute.xlu0 %444
        %447 = vset.pattern.permute.xlu0 3
        %448 = vperm.xlu0 %447, %v217
        %v449 = vpop.permute.xlu0 %448
        %451 = vset.pattern.permute.xlu0 3
        %452 = vperm.xlu0 %451, %v218
        %v453 = vpop.permute.xlu0 %452
        %455 = vset.pattern.permute.xlu0 3
        %456 = vperm.xlu0 %455, %v219
        %v457 = vpop.permute.xlu0 %456
        %459 = vset.pattern.permute.xlu0 3
        %460 = vperm.xlu0 %459, %v220
        %v461 = vpop.permute.xlu0 %460
        %463 = vset.pattern.permute.xlu0 3
        %464 = vperm.xlu0 %463, %v221
        %v465 = vpop.permute.xlu0 %464
        %v467 = vlaneseq
        %v468 = vshrl.u32 %v467, 7
        %v469 = vsub.s32 3, %v468
        %v470 = vrot.slane %v270, %v469
        %v471 = vmul.f32 %v437, %v470
        %v472 = vmul.f32 %v441, %v470
        %v473 = vmul.f32 %v445, %v470
        %v474 = vmul.f32 %v449, %v470
        %v475 = vmul.f32 %v453, %v470
        %v476 = vmul.f32 %v457, %v470
        %v477 = vmul.f32 %v461, %v470
        %v478 = vmul.f32 %v465, %v470
        %v479 = vadd.f32 %v427, %v471
        %v480 = vadd.f32 %v428, %v472
        %v481 = vadd.f32 %v429, %v473
        %v482 = vadd.f32 %v430, %v474
        %v483 = vadd.f32 %v431, %v475
        %v484 = vadd.f32 %v432, %v476
        %v485 = vadd.f32 %v433, %v477
        %v486 = vadd.f32 %v434, %v478
        %v487 = vmax.f32 %v479, 0.0
        %v488 = vmax.f32 %v480, 0.0
        %v489 = vmax.f32 %v481, 0.0
        %v490 = vmax.f32 %v482, 0.0
        %v491 = vmax.f32 %v483, 0.0
        %v492 = vmax.f32 %v484, 0.0
        %v493 = vmax.f32 %v485, 0.0
        %v494 = vmax.f32 %v486, 0.0
        %495 = vst [vmem:[%s213] sm:$0xff] %v487
        %496 = vst [vmem:[%s213 + $0x8] sm:$0xff] %v488
        %497 = vst [vmem:[%s213 + $0x10] sm:$0xff] %v489
        %498 = vst [vmem:[%s213 + $0x18] sm:$0xff] %v490
        %499 = vst [vmem:[%s213 + $0x20] sm:$0xff] %v491
        %500 = vst [vmem:[%s213 + $0x28] sm:$0xff] %v492
        %501 = vst [vmem:[%s213 + $0x30] sm:$0xff] %v493
        %502 = vst [vmem:[%s213 + $0x38] sm:$0xff] %v494
        %s503 = scalar_lea.vmem %s193, 4 [#allocation2]
        %v504 = vld [vmem:[%s503] sm:$0xf]
        %v505 = vlaneseq
        %v506 = vshrl.u32 %v505, 7
        %v507 = vsub.s32 0, %v506
        %v508 = vrot.slane %v504, %v507
        %v509 = vmul.f32 %v274, %v508
        %v510 = vmul.f32 %v279, %v508
        %v511 = vmul.f32 %v284, %v508
        %v512 = vmul.f32 %v289, %v508
        %v513 = vmul.f32 %v294, %v508
        %v514 = vmul.f32 %v299, %v508
        %v515 = vmul.f32 %v304, %v508
        %v516 = vmul.f32 %v309, %v508
        %v517 = vadd.f32 %v233, %v509
        %v518 = vadd.f32 %v238, %v510
        %v519 = vadd.f32 %v243, %v511
        %v520 = vadd.f32 %v248, %v512
        %v521 = vadd.f32 %v253, %v513
        %v522 = vadd.f32 %v258, %v514
        %v523 = vadd.f32 %v263, %v515
        %v524 = vadd.f32 %v268, %v516
        %v525 = vlaneseq
        %v526 = vshrl.u32 %v525, 7
        %v527 = vsub.s32 1, %v526
        %v528 = vrot.slane %v504, %v527
        %v529 = vmul.f32 %v333, %v528
        %v530 = vmul.f32 %v337, %v528
        %v531 = vmul.f32 %v341, %v528
        %v532 = vmul.f32 %v345, %v528
        %v533 = vmul.f32 %v349, %v528
        %v534 = vmul.f32 %v353, %v528
        %v535 = vmul.f32 %v357, %v528
        %v536 = vmul.f32 %v361, %v528
        %v537 = vadd.f32 %v517, %v529
        %v538 = vadd.f32 %v518, %v530
        %v539 = vadd.f32 %v519, %v531
        %v540 = vadd.f32 %v520, %v532
        %v541 = vadd.f32 %v521, %v533
        %v542 = vadd.f32 %v522, %v534
        %v543 = vadd.f32 %v523, %v535
        %v544 = vadd.f32 %v524, %v536
        %v545 = vlaneseq
        %v546 = vshrl.u32 %v545, 7
        %v547 = vsub.s32 2, %v546
        %v548 = vrot.slane %v504, %v547
        %v549 = vmul.f32 %v385, %v548
        %v550 = vmul.f32 %v389, %v548
        %v551 = vmul.f32 %v393, %v548
        %v552 = vmul.f32 %v397, %v548
        %v553 = vmul.f32 %v401, %v548
        %v554 = vmul.f32 %v405, %v548
        %v555 = vmul.f32 %v409, %v548
        %v556 = vmul.f32 %v413, %v548
        %v557 = vadd.f32 %v537, %v549
        %v558 = vadd.f32 %v538, %v550
        %v559 = vadd.f32 %v539, %v551
        %v560 = vadd.f32 %v540, %v552
        %v561 = vadd.f32 %v541, %v553
        %v562 = vadd.f32 %v542, %v554
        %v563 = vadd.f32 %v543, %v555
        %v564 = vadd.f32 %v544, %v556
        %v565 = vlaneseq
        %v566 = vshrl.u32 %v565, 7
        %v567 = vsub.s32 3, %v566
        %v568 = vrot.slane %v504, %v567
        %v569 = vmul.f32 %v437, %v568
        %v570 = vmul.f32 %v441, %v568
        %v571 = vmul.f32 %v445, %v568
        %v572 = vmul.f32 %v449, %v568
        %v573 = vmul.f32 %v453, %v568
        %v574 = vmul.f32 %v457, %v568
        %v575 = vmul.f32 %v461, %v568
        %v576 = vmul.f32 %v465, %v568
        %v577 = vadd.f32 %v557, %v569
        %v578 = vadd.f32 %v558, %v570
        %v579 = vadd.f32 %v559, %v571
        %v580 = vadd.f32 %v560, %v572
        %v581 = vadd.f32 %v561, %v573
        %v582 = vadd.f32 %v562, %v574
        %v583 = vadd.f32 %v563, %v575
        %v584 = vadd.f32 %v564, %v576
        %v585 = vmax.f32 %v577, 0.0
        %v586 = vmax.f32 %v578, 0.0
        %v587 = vmax.f32 %v579, 0.0
        %v588 = vmax.f32 %v580, 0.0
        %v589 = vmax.f32 %v581, 0.0
        %v590 = vmax.f32 %v582, 0.0
        %v591 = vmax.f32 %v583, 0.0
        %v592 = vmax.f32 %v584, 0.0
        %s593 = scalar_lea.vmem %s213, 64 [#allocation3]
        %594 = vst [vmem:[%s593] sm:$0xff] %v585
        %595 = vst [vmem:[%s593 + $0x8] sm:$0xff] %v586
        %596 = vst [vmem:[%s593 + $0x10] sm:$0xff] %v587
        %597 = vst [vmem:[%s593 + $0x18] sm:$0xff] %v588
        %598 = vst [vmem:[%s593 + $0x20] sm:$0xff] %v589
        %599 = vst [vmem:[%s593 + $0x28] sm:$0xff] %v590
        %600 = vst [vmem:[%s593 + $0x30] sm:$0xff] %v591
        %601 = vst [vmem:[%s593 + $0x38] sm:$0xff] %v592
        %s602 = sand.u32 %s93, 1
        %s603 = scalar_lea.sflag [#allocation4], %s602
        %s604 = sand.u32 %s93, 1
        %s605 = smul.addr %s604, 128
        %s606 = scalar_lea.vmem [#allocation3], %s605
        // Predicated region
        $region74: #{tpu_custom_call.1} parent=68 // pred_check
          %p607 = pneg %p103
        $region75: #{tpu_custom_call.1} parent=68 // pred_check_branch
          %609 = sbr.rel (%p607) target = $region77
        $region76: #{tpu_custom_call.1} parent=68 // pred_region
          %s611 = ssub.s32 2048, 2048
          %612 = vsyncadd %s603, %s611
          %s613 = smul.addr %s17, 128
          %s614 = scalar_lea.hbm %s3, %s613
          %s615 = sshll.u32 %s606, 4
          %s616 = int_to_ptr.vmem [resolvable:$true] %s615
          %621 = dma.vmem_to_hbm [thread:$0]  %s616, 2048, %s614, %s603, 128, 256, 8
        $region77: #{tpu_custom_call.1} parent=68 // pred_fallthru
          _
      $region69: #{tpu_custom_call.1} parent=5 // pred_fallthru
        _
      %p622 = scmp.le.s32.totalorder 2, %s12
      // Predicated region
      $region78: #{tpu_custom_call.1} parent=5 // pred_check
        %p623 = pneg %p622
      $region79: #{tpu_custom_call.1} parent=5 // pred_check_branch
        %625 = sbr.rel (%p623) target = $region81
      $region80: #{tpu_custom_call.1} parent=5 // pred_region
        %s626 = ssub.s32 %s12, 2
        // Predicated region
        $region82: #{tpu_custom_call.1} parent=80 // pred_check
          %p627 = pneg %p109
        $region83: #{tpu_custom_call.1} parent=80 // pred_check_branch
          %629 = sbr.rel (%p627) target = $region85
        $region84: #{tpu_custom_call.1} parent=80 // pred_region
          %s630 = sand.u32 %s94, 1
          %s631 = scalar_lea.sflag [#allocation4], %s630
          %s632 = sand.u32 %s94, 1
          %s633 = smul.addr %s632, 128
          %s634 = scalar_lea.vmem [#allocation3], %s633
          %635 = dma.done %s631, 2048
        $region85: #{tpu_custom_call.1} parent=80 // pred_fallthru
          _
      $region81: #{tpu_custom_call.1} parent=5 // pred_fallthru
        _
    $region6: #{tpu_custom_call.1} parent=1 // loop_footer
      %s16 = sadd.s32 1, %s12
    $region7: #{tpu_custom_call.1} parent=1 // loop_footer_branch
      %11 = sbr.rel target = $region3
    $region8: #{tpu_custom_call.1} parent=1 // loop_exit
      _
    %636 = vsyncpa [#allocation4], 1
    %s637 = scalar_lea.sflag [#allocation4], 1
    %638 = vsyncpa %s637, 1

</llo_original>
